<compile_context>
chip_gen: v6e
topology: v6e:2x2x1
jax: 0.10.0
libtpu: 0.0.40
codegen_flags: <defaults>
</compile_context>

<pallas_src>
import functools

import jax
import jax.numpy as jnp
from jax.experimental import pallas as pl
from jax.experimental.pallas import tpu as pltpu


_BIN_LANES = 128       # lane width of the 2-D binary layout
_BIN_MAX_ROWS = 2048   # rows per block -> 2048*128*4 B = 1 MiB per input block
_BIN_CHUNKS = 2        # parallel row chunks (one per TensorCore on v7x)
_MC_MAX_TILE = 8192    # pixels (lanes) per block for the multiclass path


def _cdiv(a, b):
    return -(-a // b)


def _round_up(x, m):
    return _cdiv(x, m) * m


# ---------------------------------------------------------------------------
# binary path (num_classes == 1)
# ---------------------------------------------------------------------------
def _binary_kernel(p_total, tiles_per_chunk, tile_rows,
                   thr_ref, pred_ref, true_ref,
                   pt_ref, sp_ref, st_ref,
                   acc_pt, acc_p, acc_t):
    c = pl.program_id(0)          # parallel row-chunk
    t = pl.program_id(1)          # sequential row-tile inside the chunk

    @pl.when(t == 0)
    def _():
        acc_pt[...] = jnp.zeros_like(acc_pt)
        acc_p[...] = jnp.zeros_like(acc_p)
        acc_t[...] = jnp.zeros_like(acc_t)

    thr = thr_ref[0]
    logits = pred_ref[...].astype(jnp.float32)            # (tile_rows, 128)
    pred = (jax.nn.sigmoid(logits) > thr).astype(jnp.float32)
    targ = true_ref[...].astype(jnp.float32)

    # Validity mask from the (unclamped) global flat pixel index.  This also
    # neutralizes garbage read past the end of the array and duplicated tiles.
    rows = jax.lax.broadcasted_iota(jnp.int32, (tile_rows, _BIN_LANES), 0)
    lanes = jax.lax.broadcasted_iota(jnp.int32, (tile_rows, _BIN_LANES), 1)
    row0 = (c * tiles_per_chunk + t) * tile_rows
    valid = (rows + row0) * _BIN_LANES + lanes < p_total
    pred = jnp.where(valid, pred, 0.0)
    targ = jnp.where(valid, targ, 0.0)

    # lane/sublane-dense accumulation: pure VALU elementwise adds per step.
    acc_pt[...] += pred * targ
    acc_p[...] += pred
    acc_t[...] += targ

    @pl.when(t == pl.num_programs(1) - 1)
    def _():
        pt_ref[...] = jnp.sum(acc_pt[...], keepdims=True)
        sp_ref[...] = jnp.sum(acc_p[...], keepdims=True)
        st_ref[...] = jnp.sum(acc_t[...], keepdims=True)


@jax.jit
def _binary_confusion(y_pred, y_true, threshold):
    p_total = y_pred.size
    flat_p = y_pred.reshape(-1)
    flat_t = y_true.reshape(-1)
    rows = _cdiv(p_total, _BIN_LANES)
    pad = rows * _BIN_LANES - p_total
    if pad:  # rare: only when N*H*W is not a multiple of 128
        flat_p = jnp.pad(flat_p, (0, pad))
        flat_t = jnp.pad(flat_t, (0, pad))
    pred2d = flat_p.reshape(rows, _BIN_LANES)
    true2d = flat_t.reshape(rows, _BIN_LANES)

    tile_rows = min(_BIN_MAX_ROWS, _round_up(rows, 8))
    num_row_tiles = _cdiv(rows, tile_rows)
    n_chunks = min(_BIN_CHUNKS, num_row_tiles)
    tiles_per_chunk = _cdiv(num_row_tiles, n_chunks)

    def in_index(c, t):
        # Clamp so a block never starts fully out of bounds; the in-kernel
        # mask zeroes any duplicated / over-read rows.
        return (jnp.minimum(c * tiles_per_chunk + t, num_row_tiles - 1), 0)

    in_spec = pl.BlockSpec((tile_rows, _BIN_LANES), in_index)
    out_struct = jax.ShapeDtypeStruct((n_chunks, 1, 1), jnp.float32)
    out_spec = pl.BlockSpec((None, 1, 1), lambda c, t: (c, 0, 0))

    thr = jnp.asarray(threshold, jnp.float32).reshape(1)
    kernel = functools.partial(_binary_kernel, p_total, tiles_per_chunk,
                               tile_rows)

    pt, sp, st = pl.pallas_call(
        kernel,
        out_shape=(out_struct, out_struct, out_struct),
        grid=(n_chunks, tiles_per_chunk),
        in_specs=[
            pl.BlockSpec(memory_space=pltpu.MemorySpace.SMEM),   # threshold
            in_spec,
            in_spec,
        ],
        out_specs=(out_spec, out_spec, out_spec),
        scratch_shapes=[pltpu.VMEM((tile_rows, _BIN_LANES), jnp.float32)] * 3,
        compiler_params=pltpu.CompilerParams(
            dimension_semantics=("parallel", "arbitrary")),
    )(thr, pred2d, true2d)

    tp = jnp.sum(pt)
    sum_p = jnp.sum(sp)
    sum_t = jnp.sum(st)
    fp = sum_p - tp
    fn = sum_t - tp
    tn = jnp.float32(p_total) - sum_p - sum_t + tp
    return tp.reshape(1), fp.reshape(1), fn.reshape(1), tn.reshape(1)


# ---------------------------------------------------------------------------
# multiclass path (num_classes > 1)
# ---------------------------------------------------------------------------
def _multiclass_kernel(hw, num_classes, tile,
                       pred_ref, label_ref,
                       pt_ref, sp_ref, st_ref,
                       acc_pt, acc_p, acc_t):
    j = pl.program_id(1)

    @pl.when(j == 0)
    def _():
        acc_pt[...] = jnp.zeros_like(acc_pt)
        acc_p[...] = jnp.zeros_like(acc_p)
        acc_t[...] = jnp.zeros_like(acc_t)

    logits = pred_ref[...].astype(jnp.float32)             # (C, tile)
    m = jnp.max(logits, axis=0, keepdims=True)
    e = jnp.exp(logits - m)
    # Exact divide kept for parity with jax.nn.softmax; switch to
    # pl.reciprocal(..., approx=True) if ~1e-3 relative error is acceptable.
    p = e / jnp.sum(e, axis=0, keepdims=True)

    lanes = jax.lax.broadcasted_iota(jnp.int32, (num_classes, tile), 1)
    valid = j * tile + lanes < hw
    cls = jax.lax.broadcasted_iota(jnp.int32, (num_classes, tile), 0)
    labels = label_ref[...].astype(jnp.int32)               # (1, tile)
    t = jnp.where(jnp.logical_and(valid, labels == cls), 1.0, 0.0)
    p = jnp.where(valid, p, 0.0)

    acc_pt[...] += p * t
    acc_p[...] += p
    acc_t[...] += t

    @pl.when(j == pl.num_programs(1) - 1)
    def _():
        pt_ref[...] = jnp.sum(acc_pt[...], axis=1, keepdims=True)
        sp_ref[...] = jnp.sum(acc_p[...], axis=1, keepdims=True)
        st_ref[...] = jnp.sum(acc_t[...], axis=1, keepdims=True)


@jax.jit
def _multiclass_confusion(y_pred, y_true):
    n, c, h, w = y_pred.shape
    hw = h * w
    pred3d = y_pred.reshape(n, c, hw)          # free reshape, no HBM transpose
    label3d = y_true.reshape(n, 1, hw).astype(jnp.int32)

    tile = min(_MC_MAX_TILE, _round_up(hw, 128))
    num_tiles = _cdiv(hw, tile)

    out_struct = jax.ShapeDtypeStruct((n, c, 1), jnp.float32)
    out_spec = pl.BlockSpec((None, c, 1), lambda b, j: (b, 0, 0))
    kernel = functools.partial(_multiclass_kernel, hw, c, tile)

    pt, sp, st = pl.pallas_call(
        kernel,
        out_shape=(out_struct, out_struct, out_struct),
        grid=(n, num_tiles),
        in_specs=[
            pl.BlockSpec((None, c, tile), lambda b, j: (b, 0, j)),
            pl.BlockSpec((None, 1, tile), lambda b, j: (b, 0, j)),
        ],
        out_specs=(out_spec, out_spec, out_spec),
        scratch_shapes=[pltpu.VMEM((c, tile), jnp.float32)] * 3,
        compiler_params=pltpu.CompilerParams(
            dimension_semantics=("parallel", "arbitrary")),
    )(pred3d, label3d)

    tp = jnp.sum(pt[:, :, 0], axis=0)                       # (C,)
    sum_p = jnp.sum(sp[:, :, 0], axis=0)
    sum_t = jnp.sum(st[:, :, 0], axis=0)
    fp = sum_p - tp
    fn = sum_t - tp
    tn = jnp.float32(n * hw) - sum_p - sum_t + tp
    return tp, fp, fn, tn


# ---------------------------------------------------------------------------
# module-level wrappers (match the PyTorch API)
# ---------------------------------------------------------------------------
class ConfusionMatrix:
    """Pallas port of dcnn_module.utils.metrics_torch.ConfusionMatrix."""

    def __init__(self, num_classes=1):
        self.num_classes = num_classes

    def __str__(self):
        return "confusion_matrix"

    def __call__(self, y_pred, y_true, threshold=0.5):
        if self.num_classes == 1:
            thr = jnp.asarray(threshold, jnp.float32)
            return _binary_confusion(y_pred, y_true, thr)
        return _multiclass_confusion(y_pred, y_true)


class IoU:
    """Pallas port of dcnn_module.utils.metrics_torch.IoU."""

    def __init__(self, num_classes=1, epsilon=1e-07):
        self.num_classes = num_classes
        self.epsilon = epsilon

    def __str__(self):
        return "iou"

    def __call__(self, y_pred, y_true, threshold=0.5):
        tp, fp, fn, _ = ConfusionMatrix(self.num_classes)(y_pred, y_true,
                                                          threshold)
        iou = tp / (tp + fp + fn + self.epsilon)
        return jnp.sum(iou) / self.num_classes


# ---------------------------------------------------------------------------
# pure-JAX references + self-test
# ---------------------------------------------------------------------------
def _ref_confusion(y_pred, y_true, num_classes, threshold=0.5):
    if num_classes == 1:
        p = (jax.nn.sigmoid(y_pred.astype(jnp.float32)) > threshold)
        p = p.astype(jnp.float32)
        t = y_true.astype(jnp.float32)
    else:
        p = jax.nn.softmax(y_pred.astype(jnp.float32), axis=1)
        t = jnp.transpose(
            jax.nn.one_hot(y_true, num_classes, dtype=jnp.float32),
            (0, 3, 1, 2))
    ax = (0, 2, 3)
    return (jnp.sum(p * t, ax), jnp.sum(p * (1 - t), ax),
            jnp.sum((1 - p) * t, ax), jnp.sum((1 - p) * (1 - t), ax))


def _ref_iou(y_pred, y_true, num_classes, threshold=0.5, eps=1e-7):
    tp, fp, fn, _ = _ref_confusion(y_pred, y_true, num_classes, threshold)
    iou = tp / (tp + fp + fn + eps)
    return jnp.sum(iou) / num_classes


def _check(got, ref, what):
    got = jnp.asarray(got)
    ref = jnp.asarray(ref)
    assert got.shape == ref.shape, (what, got.shape, ref.shape)
    assert jnp.allclose(got, ref, rtol=1e-4, atol=5e-2), (what, got, ref)


if __name__ == "__main__":
    key = jax.random.PRNGKey(0)
    k1, k2, k3, k4 = jax.random.split(key, 4)

    # --- binary path (num_classes == 1) ---
    n, h, w = 2, 16, 16
    y_pred_bin = jax.random.normal(k1, (n, 1, h, w), jnp.float32)
    y_true_bin = (jax.random.uniform(k2, (n, 1, h, w)) > 0.5).astype(jnp.float32)

    cm_bin = ConfusionMatrix(num_classes=1)(y_pred_bin, y_true_bin)
    jax.block_until_ready(cm_bin)
    for got, ref in zip(cm_bin, _ref_confusion(y_pred_bin, y_true_bin, 1)):
        _check(got, ref, "binary confusion")

    iou_bin = IoU(num_classes=1)(y_pred_bin, y_true_bin)
    jax.block_until_ready(iou_bin)
    _check(iou_bin, _ref_iou(y_pred_bin, y_true_bin, 1), "binary iou")

    # ragged pixel count + non-default threshold (exercises pad + SMEM scalar)
    y_pred_r = jax.random.normal(k3, (n, 1, 15, 15), jnp.float32)
    y_true_r = (jax.random.uniform(k4, (n, 1, 15, 15)) > 0.5).astype(jnp.float32)
    cm_r = ConfusionMatrix(num_classes=1)(y_pred_r, y_true_r, threshold=0.3)
    jax.block_until_ready(cm_r)
    for got, ref in zip(cm_r,
                        _ref_confusion(y_pred_r, y_true_r, 1, threshold=0.3)):
        _check(got, ref, "binary confusion (ragged, thr=0.3)")

    # --- multiclass path (num_classes = 4) ---
    c = 4
    y_pred_mc = jax.random.normal(k3, (n, c, h, w), jnp.float32)
    y_true_mc = jax.random.randint(k4, (n, h, w), 0, c, jnp.int32)

    cm_mc = ConfusionMatrix(num_classes=c)(y_pred_mc, y_true_mc)
    jax.block_until_ready(cm_mc)
    for got, ref in zip(cm_mc, _ref_confusion(y_pred_mc, y_true_mc, c)):
        _check(got, ref, "multiclass confusion")

    iou_mc = IoU(num_classes=c)(y_pred_mc, y_true_mc)
    jax.block_until_ready(iou_mc)
    _check(iou_mc, _ref_iou(y_pred_mc, y_true_mc, c), "multiclass iou")

    # ragged spatial size (H*W not a multiple of 128) -> exercises lane mask
    y_pred_mr = jax.random.normal(k1, (n, c, 9, 13), jnp.float32)
    y_true_mr = jax.random.randint(k2, (n, 9, 13), 0, c, jnp.int32)
    cm_mr = ConfusionMatrix(num_classes=c)(y_pred_mr, y_true_mr)
    jax.block_until_ready(cm_mr)
    for got, ref in zip(cm_mr, _ref_confusion(y_pred_mr, y_true_mr, c)):
        _check(got, ref, "multiclass confusion (ragged)")

    print("KERNEL_OK")
</pallas_src>

<mosaic_0001>
module attributes {stable_mosaic.version = 11 : i64} {
  func.func @_binary_kernel(%arg0: i32, %arg1: i32, %arg2: memref<1xf32, #tpu.memory_space<smem>>, %arg3: memref<8x128xf32, #tpu.memory_space<vmem>>, %arg4: memref<8x128xf32, #tpu.memory_space<vmem>>, %arg5: memref<1x1x1xf32, #tpu.memory_space<vmem>>, %arg6: memref<1x1x1xf32, #tpu.memory_space<vmem>>, %arg7: memref<1x1x1xf32, #tpu.memory_space<vmem>>, %arg8: memref<8x128xf32, #tpu.memory_space<vmem>>, %arg9: memref<8x128xf32, #tpu.memory_space<vmem>>, %arg10: memref<8x128xf32, #tpu.memory_space<vmem>>) attributes {dimension_semantics = [#tpu.dimension_semantics<parallel>, #tpu.dimension_semantics<arbitrary>], iteration_bounds = array<i64: 1, 1>, scalar_prefetch = 0 : i64, scratch_operands = 3 : i64, tpu.core_type = #tpu.core_type<tc>, window_params = [{transform_indices = @transform_0, window_bounds = array<i64: 1>}, {transform_indices = @transform_1, window_bounds = array<i64: 8, 128>}, {transform_indices = @transform_2, window_bounds = array<i64: 8, 128>}, {transform_indices = @transform_3, window_bounds = array<i64: 1, 1, 1>}, {transform_indices = @transform_4, window_bounds = array<i64: 1, 1, 1>}, {transform_indices = @transform_5, window_bounds = array<i64: 1, 1, 1>}]} {
    %c0_i32 = arith.constant 0 : i32
    %0 = arith.cmpi eq, %arg1, %c0_i32 : i32
    %1 = arith.extui %0 : i1 to i32
    %c0_i32_0 = arith.constant 0 : i32
    %2 = arith.cmpi ne, %1, %c0_i32_0 : i32
    scf.if %2 {
      %cst_21 = arith.constant 0.000000e+00 : f32
      %44 = vector.broadcast %cst_21 : f32 to vector<8x128xf32>
      %c0_22 = arith.constant 0 : index
      %c0_23 = arith.constant 0 : index
      %45 = vector.load %arg8[%c0_22, %c0_23] : memref<8x128xf32, #tpu.memory_space<vmem>>, vector<8x128xf32>
      tpu.vector_store %arg8[%c0_22, %c0_23], %44 {strides = array<i32>} : memref<8x128xf32, #tpu.memory_space<vmem>>, vector<8x128xf32>,
      %cst_24 = arith.constant 0.000000e+00 : f32
      %46 = vector.broadcast %cst_24 : f32 to vector<8x128xf32>
      %c0_25 = arith.constant 0 : index
      %c0_26 = arith.constant 0 : index
      %47 = vector.load %arg9[%c0_25, %c0_26] : memref<8x128xf32, #tpu.memory_space<vmem>>, vector<8x128xf32>
      tpu.vector_store %arg9[%c0_25, %c0_26], %46 {strides = array<i32>} : memref<8x128xf32, #tpu.memory_space<vmem>>, vector<8x128xf32>,
      %cst_27 = arith.constant 0.000000e+00 : f32
      %48 = vector.broadcast %cst_27 : f32 to vector<8x128xf32>
      %c0_28 = arith.constant 0 : index
      %c0_29 = arith.constant 0 : index
      %49 = vector.load %arg10[%c0_28, %c0_29] : memref<8x128xf32, #tpu.memory_space<vmem>>, vector<8x128xf32>
      tpu.vector_store %arg10[%c0_28, %c0_29], %48 {strides = array<i32>} : memref<8x128xf32, #tpu.memory_space<vmem>>, vector<8x128xf32>,
    } else {
    }
    %c0 = arith.constant 0 : index
    %3 = memref.load %arg2[%c0] : memref<1xf32, #tpu.memory_space<smem>>
    %c0_1 = arith.constant 0 : index
    %c0_2 = arith.constant 0 : index
    %4 = vector.load %arg3[%c0_1, %c0_2] : memref<8x128xf32, #tpu.memory_space<vmem>>, vector<8x128xf32>
    %5 = arith.negf %4 : vector<8x128xf32>
    %6 = math.exp %5 : vector<8x128xf32>
    %cst = arith.constant 1.000000e+00 : f32
    %7 = vector.broadcast %cst : f32 to vector<8x128xf32>
    %8 = arith.addf %7, %6 : vector<8x128xf32>
    %9 = arith.divf %7, %8 : vector<8x128xf32>
    %10 = vector.broadcast %3 : f32 to vector<8x128xf32>
    %11 = arith.cmpf ogt, %9, %10 : vector<8x128xf32>
    %12 = arith.extui %11 : vector<8x128xi1> to vector<8x128xi32>
    %13 = arith.sitofp %12 : vector<8x128xi32> to vector<8x128xf32>
    %c0_3 = arith.constant 0 : index
    %c0_4 = arith.constant 0 : index
    %14 = vector.load %arg4[%c0_3, %c0_4] : memref<8x128xf32, #tpu.memory_space<vmem>>, vector<8x128xf32>
    %15 = tpu.iota {dimensions = array<i32: 0>} : vector<8x128xi32>
    %16 = tpu.iota {dimensions = array<i32: 1>} : vector<8x128xi32>
    %c1_i32 = arith.constant 1 : i32
    %17 = arith.muli %arg0, %c1_i32 : i32
    %18 = arith.addi %17, %arg1 : i32
    %c8_i32 = arith.constant 8 : i32
    %19 = arith.muli %18, %c8_i32 : i32
    %20 = vector.broadcast %19 : i32 to vector<8x128xi32>
    %21 = arith.addi %15, %20 : vector<8x128xi32>
    %c128_i32 = arith.constant 128 : i32
    %22 = vector.broadcast %c128_i32 : i32 to vector<8x128xi32>
    %23 = arith.muli %21, %22 : vector<8x128xi32>
    %24 = arith.addi %23, %16 : vector<8x128xi32>
    %c512_i32 = arith.constant 512 : i32
    %25 = vector.broadcast %c512_i32 : i32 to vector<8x128xi32>
    %26 = arith.cmpi slt, %24, %25 : vector<8x128xi32>
    %cst_5 = arith.constant 0.000000e+00 : f32
    %27 = vector.broadcast %cst_5 : f32 to vector<8x128xf32>
    %28 = arith.select %26, %13, %27 : vector<8x128xi1>, vector<8x128xf32>
    %cst_6 = arith.constant 0.000000e+00 : f32
    %29 = vector.broadcast %cst_6 : f32 to vector<8x128xf32>
    %30 = arith.select %26, %14, %29 : vector<8x128xi1>, vector<8x128xf32>
    %c0_7 = arith.constant 0 : index
    %c0_8 = arith.constant 0 : index
    %31 = vector.load %arg8[%c0_7, %c0_8] : memref<8x128xf32, #tpu.memory_space<vmem>>, vector<8x128xf32>
    %32 = arith.mulf %28, %30 : vector<8x128xf32>
    %33 = arith.addf %31, %32 : vector<8x128xf32>
    %c0_9 = arith.constant 0 : index
    %c0_10 = arith.constant 0 : index
    %34 = vector.load %arg8[%c0_9, %c0_10] : memref<8x128xf32, #tpu.memory_space<vmem>>, vector<8x128xf32>
    tpu.vector_store %arg8[%c0_9, %c0_10], %33 {strides = array<i32>} : memref<8x128xf32, #tpu.memory_space<vmem>>, vector<8x128xf32>,
    %c0_11 = arith.constant 0 : index
    %c0_12 = arith.constant 0 : index
    %35 = vector.load %arg9[%c0_11, %c0_12] : memref<8x128xf32, #tpu.memory_space<vmem>>, vector<8x128xf32>
    %36 = arith.addf %35, %28 : vector<8x128xf32>
    %c0_13 = arith.constant 0 : index
    %c0_14 = arith.constant 0 : index
    %37 = vector.load %arg9[%c0_13, %c0_14] : memref<8x128xf32, #tpu.memory_space<vmem>>, vector<8x128xf32>
    tpu.vector_store %arg9[%c0_13, %c0_14], %36 {strides = array<i32>} : memref<8x128xf32, #tpu.memory_space<vmem>>, vector<8x128xf32>,
    %c0_15 = arith.constant 0 : index
    %c0_16 = arith.constant 0 : index
    %38 = vector.load %arg10[%c0_15, %c0_16] : memref<8x128xf32, #tpu.memory_space<vmem>>, vector<8x128xf32>
    %39 = arith.addf %38, %30 : vector<8x128xf32>
    %c0_17 = arith.constant 0 : index
    %c0_18 = arith.constant 0 : index
    %40 = vector.load %arg10[%c0_17, %c0_18] : memref<8x128xf32, #tpu.memory_space<vmem>>, vector<8x128xf32>
    tpu.vector_store %arg10[%c0_17, %c0_18], %39 {strides = array<i32>} : memref<8x128xf32, #tpu.memory_space<vmem>>, vector<8x128xf32>,
    %c0_i32_19 = arith.constant 0 : i32
    %41 = arith.cmpi eq, %arg1, %c0_i32_19 : i32
    %42 = arith.extui %41 : i1 to i32
    %c0_i32_20 = arith.constant 0 : i32
    %43 = arith.cmpi ne, %42, %c0_i32_20 : i32
    scf.if %43 {
      %c0_21 = arith.constant 0 : index
      %c0_22 = arith.constant 0 : index
      %44 = vector.load %arg8[%c0_21, %c0_22] : memref<8x128xf32, #tpu.memory_space<vmem>>, vector<8x128xf32>
      %45 = vector.shape_cast %44 : vector<8x128xf32> to vector<1x8x128xf32>
      %cst_23 = arith.constant dense<0.000000e+00> : vector<1xf32>
      %46 = vector.multi_reduction <add>, %45, %cst_23 [1, 2] : vector<1x8x128xf32> to vector<1xf32>
      %47 = vector.shape_cast %46 : vector<1xf32> to vector<1x1x1xf32>
      %48 = vector.extract %47[0, 0, 0] : f32 from vector<1x1x1xf32>
      %49 = vector.broadcast %48 : f32 to vector<1x1xf32>
      %c0_24 = arith.constant 0 : index
      %c0_25 = arith.constant 0 : index
      %c0_26 = arith.constant 0 : index
      %50 = vector.load %arg5[%c0_24, %c0_25, %c0_26] : memref<1x1x1xf32, #tpu.memory_space<vmem>>, vector<1x1x1xf32>
      %51 = vector.shape_cast %50 : vector<1x1x1xf32> to vector<1x1xf32>
      %52 = vector.shape_cast %49 : vector<1x1xf32> to vector<1x1x1xf32>
      tpu.vector_store %arg5[%c0_24, %c0_25, %c0_26], %52 {strides = array<i32>} : memref<1x1x1xf32, #tpu.memory_space<vmem>>, vector<1x1x1xf32>,
      %c0_27 = arith.constant 0 : index
      %c0_28 = arith.constant 0 : index
      %53 = vector.load %arg9[%c0_27, %c0_28] : memref<8x128xf32, #tpu.memory_space<vmem>>, vector<8x128xf32>
      %54 = vector.shape_cast %53 : vector<8x128xf32> to vector<1x8x128xf32>
      %cst_29 = arith.constant dense<0.000000e+00> : vector<1xf32>
      %55 = vector.multi_reduction <add>, %54, %cst_29 [1, 2] : vector<1x8x128xf32> to vector<1xf32>
      %56 = vector.shape_cast %55 : vector<1xf32> to vector<1x1x1xf32>
      %57 = vector.extract %56[0, 0, 0] : f32 from vector<1x1x1xf32>
      %58 = vector.broadcast %57 : f32 to vector<1x1xf32>
      %c0_30 = arith.constant 0 : index
      %c0_31 = arith.constant 0 : index
      %c0_32 = arith.constant 0 : index
      %59 = vector.load %arg6[%c0_30, %c0_31, %c0_32] : memref<1x1x1xf32, #tpu.memory_space<vmem>>, vector<1x1x1xf32>
      %60 = vector.shape_cast %59 : vector<1x1x1xf32> to vector<1x1xf32>
      %61 = vector.shape_cast %58 : vector<1x1xf32> to vector<1x1x1xf32>
      tpu.vector_store %arg6[%c0_30, %c0_31, %c0_32], %61 {strides = array<i32>} : memref<1x1x1xf32, #tpu.memory_space<vmem>>, vector<1x1x1xf32>,
      %c0_33 = arith.constant 0 : index
      %c0_34 = arith.constant 0 : index
      %62 = vector.load %arg10[%c0_33, %c0_34] : memref<8x128xf32, #tpu.memory_space<vmem>>, vector<8x128xf32>
      %63 = vector.shape_cast %62 : vector<8x128xf32> to vector<1x8x128xf32>
      %cst_35 = arith.constant dense<0.000000e+00> : vector<1xf32>
      %64 = vector.multi_reduction <add>, %63, %cst_35 [1, 2] : vector<1x8x128xf32> to vector<1xf32>
      %65 = vector.shape_cast %64 : vector<1xf32> to vector<1x1x1xf32>
      %66 = vector.extract %65[0, 0, 0] : f32 from vector<1x1x1xf32>
      %67 = vector.broadcast %66 : f32 to vector<1x1xf32>
      %c0_36 = arith.constant 0 : index
      %c0_37 = arith.constant 0 : index
      %c0_38 = arith.constant 0 : index
      %68 = vector.load %arg7[%c0_36, %c0_37, %c0_38] : memref<1x1x1xf32, #tpu.memory_space<vmem>>, vector<1x1x1xf32>
      %69 = vector.shape_cast %68 : vector<1x1x1xf32> to vector<1x1xf32>
      %70 = vector.shape_cast %67 : vector<1x1xf32> to vector<1x1x1xf32>
      tpu.vector_store %arg7[%c0_36, %c0_37, %c0_38], %70 {strides = array<i32>} : memref<1x1x1xf32, #tpu.memory_space<vmem>>, vector<1x1x1xf32>,
    } else {
    }
    return
  }
  func.func @transform_0(%arg0: i32, %arg1: i32) -> i32 {
    %c0_i32 = arith.constant 0 : i32
    %c0_i32_0 = arith.constant 0 : i32
    return %c0_i32 : i32
  }
  func.func @transform_1(%arg0: i32, %arg1: i32) -> (i32, i32) {
    %c1_i32 = arith.constant 1 : i32
    %0 = arith.muli %arg0, %c1_i32 : i32
    %1 = arith.addi %0, %arg1 : i32
    %c0_i32 = arith.constant 0 : i32
    %2 = arith.minsi %1, %c0_i32 : i32
    %c0_i32_0 = arith.constant 0 : i32
    %c0_i32_1 = arith.constant 0 : i32
    return %2, %c0_i32_0 : i32, i32
  }
  func.func @transform_2(%arg0: i32, %arg1: i32) -> (i32, i32) {
    %c1_i32 = arith.constant 1 : i32
    %0 = arith.muli %arg0, %c1_i32 : i32
    %1 = arith.addi %0, %arg1 : i32
    %c0_i32 = arith.constant 0 : i32
    %2 = arith.minsi %1, %c0_i32 : i32
    %c0_i32_0 = arith.constant 0 : i32
    %c0_i32_1 = arith.constant 0 : i32
    return %2, %c0_i32_0 : i32, i32
  }
  func.func @transform_3(%arg0: i32, %arg1: i32) -> (i32, i32, i32) {
    %c0_i32 = arith.constant 0 : i32
    %c0_i32_0 = arith.constant 0 : i32
    %c0_i32_1 = arith.constant 0 : i32
    return %arg0, %c0_i32, %c0_i32_0 : i32, i32, i32
  }
  func.func @transform_4(%arg0: i32, %arg1: i32) -> (i32, i32, i32) {
    %c0_i32 = arith.constant 0 : i32
    %c0_i32_0 = arith.constant 0 : i32
    %c0_i32_1 = arith.constant 0 : i32
    return %arg0, %c0_i32, %c0_i32_0 : i32, i32, i32
  }
  func.func @transform_5(%arg0: i32, %arg1: i32) -> (i32, i32, i32) {
    %c0_i32 = arith.constant 0 : i32
    %c0_i32_0 = arith.constant 0 : i32
    %c0_i32_1 = arith.constant 0 : i32
    return %arg0, %c0_i32, %c0_i32_0 : i32, i32, i32
  }
}

</mosaic_0001>

<llo_original>
// kernel: _binary_confusion.1
$region0: #{_binary_confusion.1}
  #allocation0 [shape = 'u32[]', space=smem, size = 0x4, offset = 0x4, fixed_abs, tag = 'smem constant byte address 0x4 - core index']
  #allocation1 [shape = 'u32[144,128]{1,0:T(1,128)}', space=vmem, size = 0x12000, scoped, tag = 'internal scratch']
  #allocation2 [shape = 'f32[8,128]{1,0:T(8,128)}', space=vmem, size = 0x1000, scoped, tag = 'scratch operand']
  #allocation3 [shape = 'f32[8,128]{1,0:T(8,128)}', space=vmem, size = 0x1000, scoped, tag = 'scratch operand']
  #allocation4 [shape = 'f32[8,128]{1,0:T(8,128)}', space=vmem, size = 0x1000, scoped, tag = 'scratch operand']
  #allocation5 [shape = 'f32[1]{0:T(128)S(6)}', space=smem, size = 0x200, scoped, tag = 'scoped memory for _binary_confusion.1']
  %s0 = inlined_call_operand.<no memory space> [shape: f32[1], index: 0, kind: input, shape index: {}]
  %s1 = inlined_call_operand.vmem [shape: f32[4,128], index: 1, kind: input, shape index: {}]
  %s2 = inlined_call_operand.vmem [shape: f32[4,128], index: 2, kind: input, shape index: {}]
  %s3 = inlined_call_operand.hbm [shape: f32[1,1,1], index: 3, kind: output, shape index: {0}]
  %s4 = inlined_call_operand.hbm [shape: f32[1,1,1], index: 4, kind: output, shape index: {1}]
  %s5 = inlined_call_operand.hbm [shape: f32[1,1,1], index: 5, kind: output, shape index: {2}]
  %6 = xla_tuple %s3, %s4, %s5
  %s7 = sld [smem:[#allocation0]]
  $region46: #{_binary_confusion.1} parent=0
    _
  %s9 = ssub.s32 1, %s7
  %s10 = scalar_select 0, %s9, %s7
  %11 = sst [smem:[#allocation5]] %s0
  $region1: #{_binary_confusion.1} parent=0
    #allocation6 [shape = 'u8[512]{0}', space=vmem, size = 0x400, scoped, tag = 'output window, operand 0, single buffered']
    #allocation7 [shape = 's32[1]{0}', space=sflag, size = 0x4, scoped, tag = 'scoped memory for _binary_confusion.1']
    #allocation8 [shape = 'u8[512]{0}', space=vmem, size = 0x400, scoped, tag = 'output window, operand 1, single buffered']
    #allocation9 [shape = 's32[1]{0}', space=sflag, size = 0x4, scoped, tag = 'scoped memory for _binary_confusion.1']
    #allocation10 [shape = 'u8[512]{0}', space=vmem, size = 0x400, scoped, tag = 'output window, operand 2, single buffered']
    %12 = vsyncpa [#allocation7], 0
    %13 = vsyncpa [#allocation9], 0
    // Predicated region
    $region2: #{_binary_confusion.1} parent=1 // pred_check
      _
    $region3: #{_binary_confusion.1} parent=1 // pred_check_branch
      %15 = sbr.rel (0) target = $region5
    $region4: #{_binary_confusion.1} parent=1 // pred_region
      _
    $region5: #{_binary_confusion.1} parent=1 // pred_fallthru
      _
    // Predicated region
    $region6: #{_binary_confusion.1} parent=1 // pred_check
      _
    $region7: #{_binary_confusion.1} parent=1 // pred_check_branch
      %17 = sbr.rel (0) target = $region9
    $region8: #{_binary_confusion.1} parent=1 // pred_region
      %s18 = sadd.s32 0, 0
      %p19 = scmp.lt.s32.totalorder %s18, 0
      %s20 = scalar_select %p19, %s18, 0
      %s21 = smul.u32 2, %s20
      %s22 = ssub.s32 1, %s21
      %s23 = smul.u32 64, %s22
      %p24 = scmp.lt.s32.totalorder %s21, 0
      %s25 = scalar_select %p24, %s21, 0
      %s26 = smul.addr %s25, 4
      %s27 = scalar_lea.vmem %s1, %s26
      %s28 = sadd.s32 0, 0
      %p29 = scmp.lt.s32.totalorder %s28, 0
      %s30 = scalar_select %p29, %s28, 0
      %s31 = smul.u32 2, %s30
      %s32 = ssub.s32 1, %s31
      %s33 = smul.u32 64, %s32
    $region9: #{_binary_confusion.1} parent=1 // pred_fallthru
      _
    // Predicated region
    $region10: #{_binary_confusion.1} parent=1 // pred_check
      _
    $region11: #{_binary_confusion.1} parent=1 // pred_check_branch
      %35 = sbr.rel (0) target = $region13
    $region12: #{_binary_confusion.1} parent=1 // pred_region
      %s36 = sadd.s32 0, 0
      %p37 = scmp.lt.s32.totalorder %s36, 0
      %s38 = scalar_select %p37, %s36, 0
      %s39 = smul.u32 2, %s38
      %s40 = ssub.s32 1, %s39
      %s41 = smul.u32 64, %s40
      %p42 = scmp.lt.s32.totalorder %s39, 0
      %s43 = scalar_select %p42, %s39, 0
      %s44 = smul.addr %s43, 4
      %s45 = scalar_lea.vmem %s2, %s44
      %s46 = sadd.s32 0, 0
      %p47 = scmp.lt.s32.totalorder %s46, 0
      %s48 = scalar_select %p47, %s46, 0
      %s49 = smul.u32 2, %s48
      %s50 = ssub.s32 1, %s49
      %s51 = smul.u32 64, %s50
    $region13: #{_binary_confusion.1} parent=1 // pred_fallthru
      _
    %s52 = sadd.s32 0, 0
    %p53 = scmp.lt.s32.totalorder %s52, 0
    %s54 = scalar_select %p53, %s52, 0
    %s55 = smul.u32 2, %s54
    %s56 = ssub.s32 1, %s55
    %s57 = smul.u32 64, %s56
    %p58 = scmp.lt.s32.totalorder %s55, 0
    %s59 = scalar_select %p58, %s55, 0
    %s60 = smul.addr %s59, 4
    %s61 = scalar_lea.vmem %s1, %s60
    %s62 = sadd.s32 0, 0
    %p63 = scmp.lt.s32.totalorder %s62, 0
    %s64 = scalar_select %p63, %s62, 0
    %s65 = smul.u32 2, %s64
    %s66 = ssub.s32 1, %s65
    %s67 = smul.u32 64, %s66
    %p68 = scmp.lt.s32.totalorder %s65, 0
    %s69 = scalar_select %p68, %s65, 0
    %s70 = smul.addr %s69, 4
    %s71 = scalar_lea.vmem %s2, %s70
    %s72 = sadd.s32 0, 0
    %p73 = scmp.lt.s32.totalorder %s72, 0
    %s74 = scalar_select %p73, %s72, 0
    %s75 = smul.u32 2, %s74
    %s76 = ssub.s32 1, %s75
    %s77 = smul.u32 64, %s76
    %p78 = scmp.lt.s32.totalorder %s75, 0
    %s79 = scalar_select %p78, %s75, 0
    %s80 = smul.addr %s79, 4
    %s81 = scalar_lea.vmem %s1, %s80
    %s82 = sadd.s32 0, 0
    %p83 = scmp.lt.s32.totalorder %s82, 0
    %s84 = scalar_select %p83, %s82, 0
    %s85 = smul.u32 2, %s84
    %s86 = ssub.s32 1, %s85
    %s87 = smul.u32 64, %s86
    %s88 = sadd.s32 0, 0
    %p89 = scmp.lt.s32.totalorder %s88, 0
    %s90 = scalar_select %p89, %s88, 0
    %s91 = smul.u32 2, %s90
    %s92 = ssub.s32 1, %s91
    %s93 = smul.u32 64, %s92
    %p94 = scmp.lt.s32.totalorder %s91, 0
    %s95 = scalar_select %p94, %s91, 0
    %s96 = smul.addr %s95, 4
    %s97 = scalar_lea.vmem %s2, %s96
    %s98 = sadd.s32 0, 0
    %p99 = scmp.lt.s32.totalorder %s98, 0
    %s100 = scalar_select %p99, %s98, 0
    %s101 = smul.u32 2, %s100
    %s102 = ssub.s32 1, %s101
    %s103 = smul.u32 64, %s102
    %p104 = scmp.eq.s32.totalorder 0, 0
    // Predicated region
    $region14: #{_binary_confusion.1} parent=1 // pred_check
      %p105 = pneg %p104
    $region15: #{_binary_confusion.1} parent=1 // pred_check_branch
      %107 = sbr.rel (%p105) target = $region17
    $region16: #{_binary_confusion.1} parent=1 // pred_region
      %108 = vst [vmem:[#allocation2] sm:$0xff] 0.0
      %109 = vst [vmem:[#allocation3] sm:$0xff] 0.0
      %110 = vst [vmem:[#allocation4] sm:$0xff] 0.0
    $region17: #{_binary_confusion.1} parent=1 // pred_fallthru
      _
    %s111 = sld [smem:[#allocation5]]
    %v112 = vld [vmem:[%s81] sm:$0xff]
    %v113 = vxor.u32 %v112, 2147483648
    %v114 = vmul.f32 %v113, 1.442695
    %v115 = vpow.pop %v114
    %v116 = vadd.f32 %v115, 1.0
    %v117 = vrcp.pop %v116
    %v118 = vmul.f32 1.0, %v117
    %v119 = vstv %s111
    %vm120 = vcmp.gt.f32.partialorder %v118, %v119
    %v121 = vsel %vm120, 1, 0
    %v122 = vcvt.s32.f32 %v121
    %v123 = vld [vmem:[%s97] sm:$0xff]
    %v124 = vlaneseq
    %v125 = vshrl.u32 %v124, 7
    %v126 = vlaneseq
    %v127 = vand.u32 %v126, 127
    %s128 = sadd.s32 0, 0
    %s129 = smul.u32 %s128, 8
    %v130 = vstv %s129
    %v131 = vadd.s32 %v125, %v130
    %v132 = vmul.u32 %v131, 128
    %v133 = vadd.s32 %v132, %v127
    %vm134 = vcmp.lt.s32.totalorder %v133, 512
    %v135 = vsel %vm134, %v122, 0.0
    %v136 = vsel %vm134, %v123, 0.0
    %v137 = vld [vmem:[#allocation2] sm:$0xff]
    %v138 = vmul.f32 %v135, %v136
    %v139 = vadd.f32 %v137, %v138
    %140 = vst [vmem:[#allocation2] sm:$0xff] %v139
    %v141 = vld [vmem:[#allocation3] sm:$0xff]
    %v142 = vadd.f32 %v141, %v135
    %143 = vst [vmem:[#allocation3] sm:$0xff] %v142
    %v144 = vld [vmem:[#allocation4] sm:$0xff]
    %v145 = vadd.f32 %v144, %v136
    %146 = vst [vmem:[#allocation4] sm:$0xff] %v145
    // Predicated region
    $region18: #{_binary_confusion.1} parent=1 // pred_check
      %p147 = pneg %p104
    $region19: #{_binary_confusion.1} parent=1 // pred_check_branch
      %149 = sbr.rel (%p147) target = $region21
    $region20: #{_binary_confusion.1} parent=1 // pred_region
      %v150 = vld [vmem:[#allocation2] sm:$0xff]
      %151 = vadd.xlane.f32.xlu0 %v150
      %v152 = vpop.xlane.xlu0 %151
      %v153 = vrot.slane %v152, 4
      %v154 = vadd.f32 %v152, %v153
      %v155 = vrot.slane %v154, 2
      %v156 = vadd.f32 %v154, %v155
      %v157 = vrot.slane %v156, 1
      %v158 = vadd.f32 %v156, %v157
      %s159 = vtos %v158
      %v160 = vstv %s159
      %vm161 = vcmask 0
      %162 = vst.msk [vmem:[#allocation6] sm:$0x1] %vm161, %v160
      %v163 = vld [vmem:[#allocation3] sm:$0xff]
      %164 = vadd.xlane.f32.xlu0 %v163
      %v165 = vpop.xlane.xlu0 %164
      %v166 = vrot.slane %v165, 4
      %v167 = vadd.f32 %v165, %v166
      %v168 = vrot.slane %v167, 2
      %v169 = vadd.f32 %v167, %v168
      %v170 = vrot.slane %v169, 1
      %v171 = vadd.f32 %v169, %v170
      %s172 = vtos %v171
      %v173 = vstv %s172
      %174 = vst.msk [vmem:[#allocation8] sm:$0x1] %vm161, %v173
      %v175 = vld [vmem:[#allocation4] sm:$0xff]
      %176 = vadd.xlane.f32.xlu0 %v175
      %v177 = vpop.xlane.xlu0 %176
      %v178 = vrot.slane %v177, 4
      %v179 = vadd.f32 %v177, %v178
      %v180 = vrot.slane %v179, 2
      %v181 = vadd.f32 %v179, %v180
      %v182 = vrot.slane %v181, 1
      %v183 = vadd.f32 %v181, %v182
      %s184 = vtos %v183
      %v185 = vstv %s184
      %186 = vst.msk [vmem:[#allocation10] sm:$0x1] %vm161, %v185
    $region21: #{_binary_confusion.1} parent=1 // pred_fallthru
      _
    // Predicated region
    $region22: #{_binary_confusion.1} parent=1 // pred_check
      _
    $region23: #{_binary_confusion.1} parent=1 // pred_check_branch
      %188 = sbr.rel (0) target = $region25
    $region24: #{_binary_confusion.1} parent=1 // pred_region
      %s190 = ssub.s32 16, 16
      %191 = vsyncadd [#allocation7], %s190
      %s193 = sshll.u32 [#allocation6], 4
      %s194 = int_to_ptr.vmem [resolvable:$true] %s193
      %196 = dma.vmem_to_hbm [thread:$0]  %s194, 16, %s3, [#allocation7]
    $region25: #{_binary_confusion.1} parent=1 // pred_fallthru
      _
    // Predicated region
    $region26: #{_binary_confusion.1} parent=1 // pred_check
      _
    $region27: #{_binary_confusion.1} parent=1 // pred_check_branch
      %198 = sbr.rel (0) target = $region29
    $region28: #{_binary_confusion.1} parent=1 // pred_region
      %s200 = ssub.s32 16, 16
      %201 = vsyncadd [#allocation9], %s200
      %s203 = sshll.u32 [#allocation8], 4
      %s204 = int_to_ptr.vmem [resolvable:$true] %s203
      %206 = dma.vmem_to_hbm [thread:$0]  %s204, 16, %s4, [#allocation9]
    $region29: #{_binary_confusion.1} parent=1 // pred_fallthru
      _
    // Predicated region
    $region30: #{_binary_confusion.1} parent=1 // pred_check
      _
    $region31: #{_binary_confusion.1} parent=1 // pred_check_branch
      %208 = sbr.rel (0) target = $region33
    $region32: #{_binary_confusion.1} parent=1 // pred_region
      %s210 = ssub.s32 16, 16
      %211 = vsyncadd [#allocation9], %s210
      %s213 = sshll.u32 [#allocation10], 4
      %s214 = int_to_ptr.vmem [resolvable:$true] %s213
      %216 = dma.vmem_to_hbm [thread:$0]  %s214, 16, %s5, [#allocation9]
    $region33: #{_binary_confusion.1} parent=1 // pred_fallthru
      _
    // Predicated region
    $region34: #{_binary_confusion.1} parent=1 // pred_check
      _
    $region35: #{_binary_confusion.1} parent=1 // pred_check_branch
      %218 = sbr.rel (0) target = $region37
    $region36: #{_binary_confusion.1} parent=1 // pred_region
      %219 = dma.done [#allocation7], 16
    $region37: #{_binary_confusion.1} parent=1 // pred_fallthru
      _
    // Predicated region
    $region38: #{_binary_confusion.1} parent=1 // pred_check
      _
    $region39: #{_binary_confusion.1} parent=1 // pred_check_branch
      %221 = sbr.rel (0) target = $region41
    $region40: #{_binary_confusion.1} parent=1 // pred_region
      %222 = dma.done [#allocation9], 16
    $region41: #{_binary_confusion.1} parent=1 // pred_fallthru
      _
    // Predicated region
    $region42: #{_binary_confusion.1} parent=1 // pred_check
      _
    $region43: #{_binary_confusion.1} parent=1 // pred_check_branch
      %224 = sbr.rel (0) target = $region45
    $region44: #{_binary_confusion.1} parent=1 // pred_region
      %225 = dma.done [#allocation9], 16
    $region45: #{_binary_confusion.1} parent=1 // pred_fallthru
      _
    %226 = vsyncpa [#allocation7], 1
    %227 = vsyncpa [#allocation9], 1

</llo_original>
